<compile_context>
chip_gen: v7x
topology: tpu7x:2x2x1
jax: 0.10.0
libtpu: 0.0.40
codegen_flags: <defaults>
</compile_context>

<pallas_src>
import jax
import jax.numpy as jnp
from jax.experimental import pallas as pl
from jax.experimental.pallas import tpu as pltpu

# ---- scaled-down problem sizes (ResNet-50 would give C=2048, H=W=7) --------
B = 2             # batch
C = 64            # in_features / backbone channels
H = W = 8         # spatial size of backbone feature map
HIDDEN = C // 4   # SE hidden nodes (int(in_features / 4))
NUM_CLASSES = 5
MOMENTUM = 0.9
EPS = 1e-12       # F.normalize eps

LANE = 128
VMEM_BUDGET = 48 << 20   # tile-sizing budget; fits v7x's 64 MiB physical VMEM


def network_head_kernel(x_ref,            # (Bt, C, HW)  NCHW-native features
                        w1_ref, b1_ref,    # SE 1x1 conv #1: (C, HIDDEN), (1, HIDDEN)
                        w2_ref, b2_ref,    # SE 1x1 conv #2: (HIDDEN, C), (1, C)
                        wn_ref,            # (C, Kpad)  blended+normalized+bias-folded
                        o_ref):            # (Bt, Kpad)
    # bf16 (or f32) in HBM/VMEM; accumulate in f32.
    x = x_ref[...].astype(jnp.float32)                     # (Bt, C, HW)
    inv_hw = 1.0 / x.shape[-1]

    # ---- AdaptiveAvgPool2d(1): reduce over the lane (HW) axis. Cross-lane
    # reduce uses the XLU slot, which is idle in this kernel -> effectively free.
    pooled = jnp.sum(x, axis=-1) * inv_hw                   # (Bt, C)

    # ---- SE gate: 1x1 conv -> ReLU -> 1x1 conv -> sigmoid (MXU + EUP)
    h = jnp.dot(pooled, w1_ref[...],
                preferred_element_type=jnp.float32) + b1_ref[...]   # (Bt, HIDDEN)
    h = jnp.maximum(h, 0.0)
    z = jnp.dot(h, w2_ref[...],
                preferred_element_type=jnp.float32) + b2_ref[...]   # (Bt, C)
    cw = jax.nn.sigmoid(z)                                  # no inf intermediate

    # ---- identity: mean_HW(cw * x) == cw * mean_HW(x)  (gate is spatial-const)
    feat = pooled * cw                                      # (Bt, C)

    # ---- F.normalize(x): rsqrt form (EUP); eps matches PyTorch (1e-12 on norm)
    sumsq = jnp.sum(feat * feat, axis=-1, keepdims=True)    # (Bt, 1)
    x_norm = feat * jax.lax.rsqrt(jnp.maximum(sumsq, EPS * EPS))

    # ---- cosine head: weights pre-blended, column-normalized, bias-folded and
    # lane-padded -> single MXU matmul, unmasked full-lane store.
    o_ref[...] = jnp.dot(x_norm, wn_ref[...],
                         preferred_element_type=jnp.float32).astype(o_ref.dtype)


def _pick_batch_tile(b, per_row_x_bytes, resident_bytes, out_row_bytes):
    """Largest divisor of b whose double-buffered x tile (+ single-buffered
    weights + double-buffered output) fits VMEM_BUDGET; prefers multiples of 8
    and keeps >= 2 grid steps when b >= 16 (v7x has 2 TensorCores)."""
    cap = (VMEM_BUDGET - resident_bytes) // (2 * (per_row_x_bytes + out_row_bytes))
    cap = max(1, int(cap))
    if b >= 16:
        cap = min(cap, b // 2)        # >= 2 parallel grid steps for megacore
    divs = [d for d in range(1, b + 1) if b % d == 0 and d <= cap]
    mult8 = [d for d in divs if d % 8 == 0]
    return max(mult8) if mult8 else max(divs)


def network_head(features_nchw, params):
    """features_nchw: (B, C, H, W) backbone output, NCHW like PyTorch.
    Accepts bf16 or f32 features; all internal math is f32."""
    b, c, h, w = features_nchw.shape
    hw = h * w
    # NCHW-native view: merging H and W is a free contiguous reshape (no
    # relayout / extra HBM pass, unlike an NCHW->NHWC transpose).
    x = features_nchw.reshape(b, c, hw)

    hidden = params["se_w1"].shape[1]
    k = params["cs_w"].shape[1]
    k_pad = LANE * pl.cdiv(k, LANE)   # lane-dense output / final matmul

    # ---- parameter-only work, hoisted out of the kernel (batch independent,
    # once per weight update): momentum blend, F.normalize(dim=0), fold the
    # effective bias into the columns, zero-pad classes to a lane multiple.
    w_eff = MOMENTUM * params["cs_w"] + (1.0 - MOMENTUM) * params["cs_old_w"]
    b_eff = MOMENTUM * params["cs_b"] + (1.0 - MOMENTUM) * params["cs_old_b"]
    w_norm = w_eff * jax.lax.rsqrt(
        jnp.maximum(jnp.sum(w_eff * w_eff, axis=0, keepdims=True), EPS * EPS))
    wn = jnp.pad(w_norm * b_eff, ((0, 0), (0, k_pad - k)))   # (C, Kpad)

    x_itemsize = jnp.dtype(x.dtype).itemsize
    resident_bytes = 4 * (c * hidden + hidden + hidden * c + c + c * k_pad)
    per_row_x_bytes = hw * c * x_itemsize
    out_row_bytes = k_pad * 4

    b_tile = _pick_batch_tile(b, per_row_x_bytes, resident_bytes, out_row_bytes)
    grid = (b // b_tile,)

    # Explicit scoped-VMEM limit: double-buffered x tile + single-buffered
    # weights + double-buffered output + headroom (defaults OOM at prod scale).
    vmem_needed = (2 * b_tile * per_row_x_bytes + resident_bytes
                   + 2 * b_tile * out_row_bytes)
    vmem_limit = int(min(max(vmem_needed + (2 << 20), 32 << 20), 56 << 20))

    cost = pl.CostEstimate(
        flops=int(2 * b * (c * hidden + hidden * c + c * k_pad)
                  + 2 * b * hw * c + 6 * b * c),
        transcendentals=int(b * c + b),
        bytes_accessed=int(b * per_row_x_bytes + resident_bytes
                           + b * out_row_bytes))

    # Grid-invariant operands: constant index_map + single buffer (no point
    # double-buffering weights that never change across the grid).
    def wspec(shape):
        return pl.BlockSpec(shape, lambda i: (0,) * len(shape),
                            pipeline_mode=pl.Buffered(1))

    out = pl.pallas_call(
        network_head_kernel,
        out_shape=jax.ShapeDtypeStruct((b, k_pad), jnp.float32),
        grid_spec=pltpu.PrefetchScalarGridSpec(
            num_scalar_prefetch=0,
            grid=grid,
            in_specs=[
                pl.BlockSpec((b_tile, c, hw), lambda i: (i, 0, 0)),  # x (batch-tiled)
                wspec((c, hidden)),     # se_w1  (resident, single-buffered)
                wspec((1, hidden)),     # se_b1
                wspec((hidden, c)),     # se_w2
                wspec((1, c)),          # se_b2
                wspec((c, k_pad)),      # cosine weights (blended/normed/bias-folded)
            ],
            out_specs=pl.BlockSpec((b_tile, k_pad), lambda i: (i, 0)),
        ),
        compiler_params=pltpu.CompilerParams(
            dimension_semantics=("parallel",),     # megacore across batch tiles
            vmem_limit_bytes=vmem_limit),
        cost_estimate=cost,
    )(x, params["se_w1"], params["se_b1"],
      params["se_w2"], params["se_b2"], wn)

    return out[:, :k]   # drop the lane padding


def make_params(key):
    """Deterministic parameter init matching the module's __init__ recipes."""
    ks = jax.random.split(key, 6)
    # SE 1x1 convs: kaiming_uniform_ weights (fan_in based), zero bias.
    bound1 = jnp.sqrt(6.0 / C)        # conv1: fan_in = C * 1 * 1
    bound2 = jnp.sqrt(6.0 / HIDDEN)   # conv2: fan_in = HIDDEN * 1 * 1
    se_w1 = jax.random.uniform(ks[0], (HIDDEN, C), jnp.float32, -bound1, bound1)
    se_w2 = jax.random.uniform(ks[1], (C, HIDDEN), jnp.float32, -bound2, bound2)
    # CosineSimilarity: weights ~ N(0, 0.005), bias ~ N(10, 0.001); old_* same law.
    cs_w = 0.005 * jax.random.normal(ks[2], (C, NUM_CLASSES), jnp.float32)
    cs_old_w = 0.005 * jax.random.normal(ks[3], (C, NUM_CLASSES), jnp.float32)
    cs_b = 10.0 + 0.001 * jax.random.normal(ks[4], (1, NUM_CLASSES), jnp.float32)
    cs_old_b = 10.0 + 0.001 * jax.random.normal(ks[5], (1, NUM_CLASSES), jnp.float32)
    return {
        # pre-transposed to (in, out) so the kernel does plain row-major matmuls
        "se_w1": se_w1.T,                                   # (C, HIDDEN)
        "se_b1": jnp.zeros((1, HIDDEN), jnp.float32),
        "se_b2": jnp.zeros((1, C), jnp.float32),
        "se_w2": se_w2.T,                                   # (HIDDEN, C)
        "cs_w": cs_w, "cs_old_w": cs_old_w,
        "cs_b": cs_b, "cs_old_b": cs_old_b,
    }


def reference(features_nchw, p):
    """Pure-JAX reference of the original (un-optimized) forward pass."""
    b, c, h, w = features_nchw.shape
    x = features_nchw.astype(jnp.float32).reshape(b, c, h * w)
    pooled = x.mean(-1)
    hid = jnp.maximum(pooled @ p["se_w1"] + p["se_b1"], 0.0)
    cw = jax.nn.sigmoid(hid @ p["se_w2"] + p["se_b2"])
    feat = (x * cw[:, :, None]).mean(-1)                    # full se_out path
    w_eff = MOMENTUM * p["cs_w"] + (1 - MOMENTUM) * p["cs_old_w"]
    b_eff = MOMENTUM * p["cs_b"] + (1 - MOMENTUM) * p["cs_old_b"]
    xn = feat / jnp.maximum(jnp.linalg.norm(feat, axis=1, keepdims=True), EPS)
    wn = w_eff / jnp.maximum(jnp.linalg.norm(w_eff, axis=0, keepdims=True), EPS)
    return (xn @ wn) * b_eff


if __name__ == "__main__":
    key = jax.random.PRNGKey(0)
    k_feat, k_params = jax.random.split(key)
    # Stand-in for the frozen pretrained ResNet backbone output, NCHW like
    # PyTorch, delivered in bf16 (kernel accumulates in f32).
    features = jax.random.normal(
        k_feat, (B, C, H, W), jnp.float32).astype(jnp.bfloat16)
    params = make_params(k_params)

    out = jax.block_until_ready(network_head(features, params))

    ref = reference(features, params)
    assert out.shape == (B, NUM_CLASSES)
    assert jnp.allclose(out, ref, atol=1e-4, rtol=1e-4), (out, ref)
    print("KERNEL_OK")
</pallas_src>

<mosaic_0001>
module attributes {stable_mosaic.version = 11 : i64} {
  func.func @network_head_kernel(%arg0: i32, %arg1: memref<2x64x64xbf16, #tpu.memory_space<vmem>>, %arg2: memref<64x16xf32, #tpu.memory_space<vmem>>, %arg3: memref<1x16xf32, #tpu.memory_space<vmem>>, %arg4: memref<16x64xf32, #tpu.memory_space<vmem>>, %arg5: memref<1x64xf32, #tpu.memory_space<vmem>>, %arg6: memref<64x128xf32, #tpu.memory_space<vmem>>, %arg7: memref<2x128xf32, #tpu.memory_space<vmem>>) attributes {dimension_semantics = [#tpu.dimension_semantics<parallel>], iteration_bounds = array<i64: 1>, scalar_prefetch = 0 : i64, scratch_operands = 0 : i64, tpu.core_type = #tpu.core_type<tc>, window_params = [{transform_indices = @transform_0, window_bounds = array<i64: 2, 64, 64>}, {pipeline_mode = #tpu.pipeline_mode<synchronous>, transform_indices = @transform_1, window_bounds = array<i64: 64, 16>}, {pipeline_mode = #tpu.pipeline_mode<synchronous>, transform_indices = @transform_2, window_bounds = array<i64: 1, 16>}, {pipeline_mode = #tpu.pipeline_mode<synchronous>, transform_indices = @transform_3, window_bounds = array<i64: 16, 64>}, {pipeline_mode = #tpu.pipeline_mode<synchronous>, transform_indices = @transform_4, window_bounds = array<i64: 1, 64>}, {pipeline_mode = #tpu.pipeline_mode<synchronous>, transform_indices = @transform_5, window_bounds = array<i64: 64, 128>}, {transform_indices = @transform_6, window_bounds = array<i64: 2, 128>}]} {
    %c0 = arith.constant 0 : index
    %c0_0 = arith.constant 0 : index
    %c0_1 = arith.constant 0 : index
    %0 = vector.load %arg1[%c0, %c0_0, %c0_1] : memref<2x64x64xbf16, #tpu.memory_space<vmem>>, vector<2x64x64xbf16>
    %1 = arith.extf %0 : vector<2x64x64xbf16> to vector<2x64x64xf32>
    %cst = arith.constant dense<0.000000e+00> : vector<2x64xf32>
    %2 = vector.multi_reduction <add>, %1, %cst [2] : vector<2x64x64xf32> to vector<2x64xf32>
    %cst_2 = arith.constant 1.562500e-02 : f32
    %3 = vector.broadcast %cst_2 : f32 to vector<2x64xf32>
    %4 = arith.mulf %2, %3 : vector<2x64xf32>
    %c0_3 = arith.constant 0 : index
    %c0_4 = arith.constant 0 : index
    %5 = vector.load %arg2[%c0_3, %c0_4] : memref<64x16xf32, #tpu.memory_space<vmem>>, vector<64x16xf32>
    %cst_5 = arith.constant dense<0.000000e+00> : vector<2x16xf32>
    %6 = tpu.matmul %4, %5, %cst_5 {dimension_numbers = #tpu.dot_dimension_numbers<[1], [0], [0], [1], [0, 0, 1, 1], [], []>} : vector<2x64xf32>, vector<64x16xf32>, vector<2x16xf32> -> vector<2x16xf32>
    %c0_6 = arith.constant 0 : index
    %c0_7 = arith.constant 0 : index
    %7 = vector.load %arg3[%c0_6, %c0_7] : memref<1x16xf32, #tpu.memory_space<vmem>>, vector<1x16xf32>
    %8 = vector.broadcast %7 : vector<1x16xf32> to vector<2x16xf32>
    %9 = arith.addf %6, %8 : vector<2x16xf32>
    %cst_8 = arith.constant 0.000000e+00 : f32
    %10 = vector.broadcast %cst_8 : f32 to vector<2x16xf32>
    %11 = arith.maximumf %9, %10 : vector<2x16xf32>
    %c0_9 = arith.constant 0 : index
    %c0_10 = arith.constant 0 : index
    %12 = vector.load %arg4[%c0_9, %c0_10] : memref<16x64xf32, #tpu.memory_space<vmem>>, vector<16x64xf32>
    %cst_11 = arith.constant dense<0.000000e+00> : vector<2x64xf32>
    %13 = tpu.matmul %11, %12, %cst_11 {dimension_numbers = #tpu.dot_dimension_numbers<[1], [0], [0], [1], [0, 0, 1, 1], [], []>} : vector<2x16xf32>, vector<16x64xf32>, vector<2x64xf32> -> vector<2x64xf32>
    %c0_12 = arith.constant 0 : index
    %c0_13 = arith.constant 0 : index
    %14 = vector.load %arg5[%c0_12, %c0_13] : memref<1x64xf32, #tpu.memory_space<vmem>>, vector<1x64xf32>
    %15 = vector.broadcast %14 : vector<1x64xf32> to vector<2x64xf32>
    %16 = arith.addf %13, %15 : vector<2x64xf32>
    %17 = arith.negf %16 : vector<2x64xf32>
    %18 = math.exp %17 : vector<2x64xf32>
    %cst_14 = arith.constant 1.000000e+00 : f32
    %19 = vector.broadcast %cst_14 : f32 to vector<2x64xf32>
    %20 = arith.addf %19, %18 : vector<2x64xf32>
    %21 = arith.divf %19, %20 : vector<2x64xf32>
    %22 = arith.mulf %4, %21 : vector<2x64xf32>
    %23 = arith.mulf %22, %22 : vector<2x64xf32>
    %cst_15 = arith.constant dense<0.000000e+00> : vector<2xf32>
    %24 = vector.multi_reduction <add>, %23, %cst_15 [1] : vector<2x64xf32> to vector<2xf32>
    %25 = vector.shape_cast %24 : vector<2xf32> to vector<2x1xf32>
    %cst_16 = arith.constant 1.000000e-24 : f32
    %26 = vector.broadcast %cst_16 : f32 to vector<2x1xf32>
    %27 = arith.maximumf %25, %26 : vector<2x1xf32>
    %28 = math.rsqrt %27 : vector<2x1xf32>
    %29 = vector.broadcast %28 : vector<2x1xf32> to vector<2x64xf32>
    %30 = arith.mulf %22, %29 : vector<2x64xf32>
    %c0_17 = arith.constant 0 : index
    %c0_18 = arith.constant 0 : index
    %31 = vector.load %arg6[%c0_17, %c0_18] : memref<64x128xf32, #tpu.memory_space<vmem>>, vector<64x128xf32>
    %cst_19 = arith.constant dense<0.000000e+00> : vector<2x128xf32>
    %32 = tpu.matmul %30, %31, %cst_19 {dimension_numbers = #tpu.dot_dimension_numbers<[1], [0], [0], [1], [0, 0, 1, 1], [], []>} : vector<2x64xf32>, vector<64x128xf32>, vector<2x128xf32> -> vector<2x128xf32>
    %c0_20 = arith.constant 0 : index
    %c0_21 = arith.constant 0 : index
    %33 = vector.load %arg7[%c0_20, %c0_21] : memref<2x128xf32, #tpu.memory_space<vmem>>, vector<2x128xf32>
    tpu.vector_store %arg7[%c0_20, %c0_21], %32 {strides = array<i32>} : memref<2x128xf32, #tpu.memory_space<vmem>>, vector<2x128xf32>,
    return
  }
  func.func @transform_0(%arg0: i32) -> (i32, i32, i32) {
    %c0_i32 = arith.constant 0 : i32
    %c0_i32_0 = arith.constant 0 : i32
    %c0_i32_1 = arith.constant 0 : i32
    return %arg0, %c0_i32, %c0_i32_0 : i32, i32, i32
  }
  func.func @transform_1(%arg0: i32) -> (i32, i32) {
    %c0_i32 = arith.constant 0 : i32
    %c0_i32_0 = arith.constant 0 : i32
    %c0_i32_1 = arith.constant 0 : i32
    return %c0_i32, %c0_i32_0 : i32, i32
  }
  func.func @transform_2(%arg0: i32) -> (i32, i32) {
    %c0_i32 = arith.constant 0 : i32
    %c0_i32_0 = arith.constant 0 : i32
    %c0_i32_1 = arith.constant 0 : i32
    return %c0_i32, %c0_i32_0 : i32, i32
  }
  func.func @transform_3(%arg0: i32) -> (i32, i32) {
    %c0_i32 = arith.constant 0 : i32
    %c0_i32_0 = arith.constant 0 : i32
    %c0_i32_1 = arith.constant 0 : i32
    return %c0_i32, %c0_i32_0 : i32, i32
  }
  func.func @transform_4(%arg0: i32) -> (i32, i32) {
    %c0_i32 = arith.constant 0 : i32
    %c0_i32_0 = arith.constant 0 : i32
    %c0_i32_1 = arith.constant 0 : i32
    return %c0_i32, %c0_i32_0 : i32, i32
  }
  func.func @transform_5(%arg0: i32) -> (i32, i32) {
    %c0_i32 = arith.constant 0 : i32
    %c0_i32_0 = arith.constant 0 : i32
    %c0_i32_1 = arith.constant 0 : i32
    return %c0_i32, %c0_i32_0 : i32, i32
  }
  func.func @transform_6(%arg0: i32) -> (i32, i32) {
    %c0_i32 = arith.constant 0 : i32
    %c0_i32_0 = arith.constant 0 : i32
    return %arg0, %c0_i32 : i32, i32
  }
}

</mosaic_0001>

<llo_original>
// kernel: tpu_custom_call.1
$region0: #{tpu_custom_call.1}
  #allocation0 [shape = 'u32[]', space=smem, size = 0x4, offset = 0x4, fixed_abs, tag = 'smem constant byte address 0x4 - core index']
  #allocation1 [shape = 'u32[144,128]{1,0:T(1,128)}', space=vmem, size = 0x12000, scoped, tag = 'internal scratch']
  %s0 = inlined_call_operand.vmem [shape: bf16[2,64,64], index: 0, kind: input, shape index: {}]
  %s1 = inlined_call_operand.vmem [shape: f32[64,16], index: 1, kind: input, shape index: {}]
  %s2 = inlined_call_operand.vmem [shape: f32[1,16], index: 2, kind: input, shape index: {}]
  %s3 = inlined_call_operand.vmem [shape: f32[16,64], index: 3, kind: input, shape index: {}]
  %s4 = inlined_call_operand.vmem [shape: f32[1,64], index: 4, kind: input, shape index: {}]
  %s5 = inlined_call_operand.hbm [shape: f32[64,128], index: 5, kind: input, shape index: {}]
  %s6 = inlined_call_operand.hbm [shape: f32[2,128], index: 6, kind: output, shape index: {}]
  %s7 = sld [smem:[#allocation0]]
  $region38: #{tpu_custom_call.1} parent=0
    _
  %s9 = ssub.s32 1, %s7
  %s10 = scalar_select 0, %s9, %s7
  $region1: #{tpu_custom_call.1} parent=0
    #allocation2 [shape = 'u8[32768]{0}', space=vmem, size = 0x8000, scoped, tag = 'input window, operand 5, single buffered']
    #allocation3 [shape = 's32[1]{0}', space=sflag, size = 0x4, scoped, tag = 'scoped memory for tpu_custom_call.1']
    #allocation4 [shape = 's32[1]{0}', space=sflag, size = 0x4, scoped, tag = 'scoped memory for tpu_custom_call.1']
    #allocation5 [shape = 'u8[1024]{0}', space=vmem, size = 0x400, scoped, tag = 'output window, operand 0, single buffered']
    %11 = vsyncpa [#allocation3], 0
    %12 = vsyncpa [#allocation4], 0
    // Predicated region
    $region2: #{tpu_custom_call.1} parent=1 // pred_check
      _
    $region3: #{tpu_custom_call.1} parent=1 // pred_check_branch
      %14 = sbr.rel (0) target = $region5
    $region4: #{tpu_custom_call.1} parent=1 // pred_region
      _
    $region5: #{tpu_custom_call.1} parent=1 // pred_fallthru
      _
    // Predicated region
    $region6: #{tpu_custom_call.1} parent=1 // pred_check
      _
    $region7: #{tpu_custom_call.1} parent=1 // pred_check_branch
      %16 = sbr.rel (0) target = $region9
    $region8: #{tpu_custom_call.1} parent=1 // pred_region
      _
    $region9: #{tpu_custom_call.1} parent=1 // pred_fallthru
      _
    // Predicated region
    $region10: #{tpu_custom_call.1} parent=1 // pred_check
      _
    $region11: #{tpu_custom_call.1} parent=1 // pred_check_branch
      %18 = sbr.rel (0) target = $region13
    $region12: #{tpu_custom_call.1} parent=1 // pred_region
      _
    $region13: #{tpu_custom_call.1} parent=1 // pred_fallthru
      _
    // Predicated region
    $region14: #{tpu_custom_call.1} parent=1 // pred_check
      _
    $region15: #{tpu_custom_call.1} parent=1 // pred_check_branch
      %20 = sbr.rel (0) target = $region17
    $region16: #{tpu_custom_call.1} parent=1 // pred_region
      _
    $region17: #{tpu_custom_call.1} parent=1 // pred_fallthru
      _
    // Predicated region
    $region18: #{tpu_custom_call.1} parent=1 // pred_check
      _
    $region19: #{tpu_custom_call.1} parent=1 // pred_check_branch
      %22 = sbr.rel (0) target = $region21
    $region20: #{tpu_custom_call.1} parent=1 // pred_region
      _
    $region21: #{tpu_custom_call.1} parent=1 // pred_fallthru
      _
    // Predicated region
    $region22: #{tpu_custom_call.1} parent=1 // pred_check
      _
    $region23: #{tpu_custom_call.1} parent=1 // pred_check_branch
      %24 = sbr.rel (0) target = $region25
    $region24: #{tpu_custom_call.1} parent=1 // pred_region
      %s26 = ssub.s32 1024, 1024
      %27 = vsyncadd [#allocation3], %s26
      %s28 = sshll.u32 [#allocation2], 4
      %s29 = int_to_ptr.vmem [resolvable:$true] %s28
      %34 = dma.hbm_to_vmem [thread:$0]  %s5, 1024, %s29, [#allocation3], 128, 128, 8
    $region25: #{tpu_custom_call.1} parent=1 // pred_fallthru
      _
    // Predicated region
    $region26: #{tpu_custom_call.1} parent=1 // pred_check
      _
    $region27: #{tpu_custom_call.1} parent=1 // pred_check_branch
      %36 = sbr.rel (0) target = $region29
    $region28: #{tpu_custom_call.1} parent=1 // pred_region
      %37 = dma.done [#allocation3], 1024
    $region29: #{tpu_custom_call.1} parent=1 // pred_fallthru
      _
    %v38 = vld [vmem:[%s0] sm:$0xf]
    %v39 = vld [vmem:[%s0 + $0x4] sm:$0xf]
    %v40 = vld [vmem:[%s0 + $0x8] sm:$0xf]
    %v41 = vld [vmem:[%s0 + $0xc] sm:$0xf]
    %v42 = vld [vmem:[%s0 + $0x10] sm:$0xf]
    %v43 = vld [vmem:[%s0 + $0x14] sm:$0xf]
    %v44 = vld [vmem:[%s0 + $0x18] sm:$0xf]
    %v45 = vld [vmem:[%s0 + $0x1c] sm:$0xf]
    %v46 = vld [vmem:[%s0 + $0x20] sm:$0xf]
    %v47 = vld [vmem:[%s0 + $0x24] sm:$0xf]
    %v48 = vld [vmem:[%s0 + $0x28] sm:$0xf]
    %v49 = vld [vmem:[%s0 + $0x2c] sm:$0xf]
    %v50 = vld [vmem:[%s0 + $0x30] sm:$0xf]
    %v51 = vld [vmem:[%s0 + $0x34] sm:$0xf]
    %v52 = vld [vmem:[%s0 + $0x38] sm:$0xf]
    %v53 = vld [vmem:[%s0 + $0x3c] sm:$0xf]
    %v54 = vunpack.c.l.bf16 %v38
    %v55 = vunpack.c.l.bf16 %v39
    %v56 = vunpack.c.l.bf16 %v40
    %v57 = vunpack.c.l.bf16 %v41
    %v58 = vunpack.c.l.bf16 %v42
    %v59 = vunpack.c.l.bf16 %v43
    %v60 = vunpack.c.l.bf16 %v44
    %v61 = vunpack.c.l.bf16 %v45
    %v62 = vunpack.c.l.bf16 %v46
    %v63 = vunpack.c.l.bf16 %v47
    %v64 = vunpack.c.l.bf16 %v48
    %v65 = vunpack.c.l.bf16 %v49
    %v66 = vunpack.c.l.bf16 %v50
    %v67 = vunpack.c.l.bf16 %v51
    %v68 = vunpack.c.l.bf16 %v52
    %v69 = vunpack.c.l.bf16 %v53
    %vm70 = vcmask 523264
    %v71 = vsel %vm70, %v54, 0.0
    %72 = vadd.xlane.f32.xlu0 %v71
    %v73 = vpop.xlane.xlu0 %72
    %v74 = vsel %vm70, %v55, 0.0
    %75 = vadd.xlane.f32.xlu0 %v74
    %v76 = vpop.xlane.xlu0 %75
    %v77 = vsel %vm70, %v56, 0.0
    %78 = vadd.xlane.f32.xlu0 %v77
    %v79 = vpop.xlane.xlu0 %78
    %v80 = vsel %vm70, %v57, 0.0
    %81 = vadd.xlane.f32.xlu0 %v80
    %v82 = vpop.xlane.xlu0 %81
    %v83 = vsel %vm70, %v58, 0.0
    %84 = vadd.xlane.f32.xlu0 %v83
    %v85 = vpop.xlane.xlu0 %84
    %v86 = vsel %vm70, %v59, 0.0
    %87 = vadd.xlane.f32.xlu0 %v86
    %v88 = vpop.xlane.xlu0 %87
    %v89 = vsel %vm70, %v60, 0.0
    %90 = vadd.xlane.f32.xlu0 %v89
    %v91 = vpop.xlane.xlu0 %90
    %v92 = vsel %vm70, %v61, 0.0
    %93 = vadd.xlane.f32.xlu0 %v92
    %v94 = vpop.xlane.xlu0 %93
    %v95 = vsel %vm70, %v62, 0.0
    %96 = vadd.xlane.f32.xlu0 %v95
    %v97 = vpop.xlane.xlu0 %96
    %v98 = vsel %vm70, %v63, 0.0
    %99 = vadd.xlane.f32.xlu0 %v98
    %v100 = vpop.xlane.xlu0 %99
    %v101 = vsel %vm70, %v64, 0.0
    %102 = vadd.xlane.f32.xlu0 %v101
    %v103 = vpop.xlane.xlu0 %102
    %v104 = vsel %vm70, %v65, 0.0
    %105 = vadd.xlane.f32.xlu0 %v104
    %v106 = vpop.xlane.xlu0 %105
    %v107 = vsel %vm70, %v66, 0.0
    %108 = vadd.xlane.f32.xlu0 %v107
    %v109 = vpop.xlane.xlu0 %108
    %v110 = vsel %vm70, %v67, 0.0
    %111 = vadd.xlane.f32.xlu0 %v110
    %v112 = vpop.xlane.xlu0 %111
    %v113 = vsel %vm70, %v68, 0.0
    %114 = vadd.xlane.f32.xlu0 %v113
    %v115 = vpop.xlane.xlu0 %114
    %v116 = vsel %vm70, %v69, 0.0
    %117 = vadd.xlane.f32.xlu0 %v116
    %v118 = vpop.xlane.xlu0 %117
    %v119 = vmul.f32 %v73, 0.015625
    %v120 = vmul.f32 %v76, 0.015625
    %v121 = vmul.f32 %v79, 0.015625
    %v122 = vmul.f32 %v82, 0.015625
    %v123 = vmul.f32 %v85, 0.015625
    %v124 = vmul.f32 %v88, 0.015625
    %v125 = vmul.f32 %v91, 0.015625
    %v126 = vmul.f32 %v94, 0.015625
    %v127 = vmul.f32 %v97, 0.015625
    %v128 = vmul.f32 %v100, 0.015625
    %v129 = vmul.f32 %v103, 0.015625
    %v130 = vmul.f32 %v106, 0.015625
    %v131 = vmul.f32 %v109, 0.015625
    %v132 = vmul.f32 %v112, 0.015625
    %v133 = vmul.f32 %v115, 0.015625
    %v134 = vmul.f32 %v118, 0.015625
    %v135 = vld [vmem:[%s1] sm:$0xff]
    %v136 = vld [vmem:[%s1 + $0x8] sm:$0xff]
    %v137 = vld [vmem:[%s1 + $0x10] sm:$0xff]
    %v138 = vld [vmem:[%s1 + $0x18] sm:$0xff]
    %v139 = vld [vmem:[%s1 + $0x20] sm:$0xff]
    %v140 = vld [vmem:[%s1 + $0x28] sm:$0xff]
    %v141 = vld [vmem:[%s1 + $0x30] sm:$0xff]
    %v142 = vld [vmem:[%s1 + $0x38] sm:$0xff]
    %v143 = vld [vmem:[%s2] sm:$0x1]
    %v145 = vlaneseq
    %v146 = vshrl.u32 %v145, 7
    %v147 = vsub.s32 0, %v146
    %v148 = vrot.slane %v143, %v147
    %v166 = vlaneseq
    %v167 = vand.u32 %v166, 127
    %v168 = vlaneseq
    %v169 = vshrl.u32 %v168, 7
    %v170 = vsub.s32 %v167, %v169
    %v171 = vrot.slane %v119, %v170
    %v172 = vadd.s32 %v167, 4294967288
    %v173 = vlaneseq
    %v174 = vshrl.u32 %v173, 7
    %v175 = vsub.s32 %v172, %v174
    %v176 = vrot.slane %v120, %v175
    %vm177 = vcmask 130112
    %v178 = vsel %vm177, %v176, %v171
    %v179 = vadd.s32 %v167, 4294967280
    %v180 = vlaneseq
    %v181 = vshrl.u32 %v180, 7
    %v182 = vsub.s32 %v179, %v181
    %v183 = vrot.slane %v121, %v182
    %vm184 = vcmask 195712
    %v185 = vsel %vm184, %v183, %v178
    %v186 = vadd.s32 %v167, 4294967272
    %v187 = vlaneseq
    %v188 = vshrl.u32 %v187, 7
    %v189 = vsub.s32 %v186, %v188
    %v190 = vrot.slane %v122, %v189
    %vm191 = vcmask 261312
    %v192 = vsel %vm191, %v190, %v185
    %v193 = vadd.s32 %v167, 4294967264
    %v194 = vlaneseq
    %v195 = vshrl.u32 %v194, 7
    %v196 = vsub.s32 %v193, %v195
    %v197 = vrot.slane %v123, %v196
    %vm198 = vcmask 326912
    %v199 = vsel %vm198, %v197, %v192
    %v200 = vadd.s32 %v167, 4294967256
    %v201 = vlaneseq
    %v202 = vshrl.u32 %v201, 7
    %v203 = vsub.s32 %v200, %v202
    %v204 = vrot.slane %v124, %v203
    %vm205 = vcmask 392512
    %v206 = vsel %vm205, %v204, %v199
    %v207 = vadd.s32 %v167, 4294967248
    %v208 = vlaneseq
    %v209 = vshrl.u32 %v208, 7
    %v210 = vsub.s32 %v207, %v209
    %v211 = vrot.slane %v125, %v210
    %vm212 = vcmask 458112
    %v213 = vsel %vm212, %v211, %v206
    %v214 = vadd.s32 %v167, 4294967240
    %v215 = vlaneseq
    %v216 = vshrl.u32 %v215, 7
    %v217 = vsub.s32 %v214, %v216
    %v218 = vrot.slane %v126, %v217
    %vm219 = vcmask 523712
    %v220 = vsel %vm219, %v218, %v213
    %v221 = vlaneseq
    %v222 = vshrl.u32 %v221, 7
    %v223 = vsub.s32 %v167, %v222
    %v224 = vrot.slane %v127, %v223
    %v225 = vlaneseq
    %v226 = vshrl.u32 %v225, 7
    %v227 = vsub.s32 %v172, %v226
    %v228 = vrot.slane %v128, %v227
    %v229 = vsel %vm177, %v228, %v224
    %v230 = vlaneseq
    %v231 = vshrl.u32 %v230, 7
    %v232 = vsub.s32 %v179, %v231
    %v233 = vrot.slane %v129, %v232
    %v234 = vsel %vm184, %v233, %v229
    %v235 = vlaneseq
    %v236 = vshrl.u32 %v235, 7
    %v237 = vsub.s32 %v186, %v236
    %v238 = vrot.slane %v130, %v237
    %v239 = vsel %vm191, %v238, %v234
    %v240 = vlaneseq
    %v241 = vshrl.u32 %v240, 7
    %v242 = vsub.s32 %v193, %v241
    %v243 = vrot.slane %v131, %v242
    %v244 = vsel %vm198, %v243, %v239
    %v245 = vlaneseq
    %v246 = vshrl.u32 %v245, 7
    %v247 = vsub.s32 %v200, %v246
    %v248 = vrot.slane %v132, %v247
    %v249 = vsel %vm205, %v248, %v244
    %v250 = vlaneseq
    %v251 = vshrl.u32 %v250, 7
    %v252 = vsub.s32 %v207, %v251
    %v253 = vrot.slane %v133, %v252
    %v254 = vsel %vm212, %v253, %v249
    %v255 = vlaneseq
    %v256 = vshrl.u32 %v255, 7
    %v257 = vsub.s32 %v214, %v256
    %v258 = vrot.slane %v134, %v257
    %v259 = vsel %vm219, %v258, %v254
    %vm260 = vcmask 1041409
    %v261 = vsel %vm260, %v259, %v220
    %v262 = vsel %vm70, %v261, 0
    %264 = vmatprep.subr.mxu0 0.0
    %265 = vmatpush1.msra.mxu0 %v135
    %266 = vmatprep.subr.mxu0 0.0
    %267 = vmatpush1.msra.mxu0 %v136
    %268 = vmatprep.subr.mxu0 0.0
    %269 = vmatpush1.msra.mxu0 %v137
    %270 = vmatprep.subr.mxu0 0.0
    %271 = vmatpush1.msra.mxu0 %v138
    %272 = vmatprep.subr.mxu0 0.0
    %273 = vmatpush1.msra.mxu0 %v139
    %274 = vmatprep.subr.mxu0 0.0
    %275 = vmatpush1.msra.mxu0 %v140
    %276 = vmatprep.subr.mxu0 0.0
    %277 = vmatpush1.msra.mxu0 %v141
    %278 = vmatprep.subr.mxu0 0.0
    %279 = vmatpush1.msra.mxu0 %v142
    %280 = vmatprep.subr.mxu0 0.0
    %281 = vmatpush1.msra.mxu0 0.0
    %282 = vmatprep.subr.mxu0 0.0
    %283 = vmatpush1.msra.mxu0 0.0
    %284 = vmatprep.subr.mxu0 0.0
    %285 = vmatpush1.msra.mxu0 0.0
    %286 = vmatprep.subr.mxu0 0.0
    %287 = vmatpush1.msra.mxu0 0.0
    %288 = vmatprep.subr.mxu0 0.0
    %289 = vmatpush1.msra.mxu0 0.0
    %290 = vmatprep.subr.mxu0 0.0
    %291 = vmatpush1.msra.mxu0 0.0
    %292 = vmatprep.subr.mxu0 0.0
    %293 = vmatpush1.msra.mxu0 0.0
    %294 = vmatprep.subr.mxu0 0.0
    %295 = vmatpush1.msra.mxu0 0.0
    %296 = vmatprep.subr.mxu0 0.0
    %297 = vmatpush1.msra.mxu0 0.0
    %298 = vmatprep.subr.mxu0 0.0
    %299 = vmatpush1.msra.mxu0 0.0
    %300 = vmatprep.subr.mxu0 0.0
    %301 = vmatpush1.msra.mxu0 0.0
    %302 = vmatprep.subr.mxu0 0.0
    %303 = vmatpush1.msra.mxu0 0.0
    %304 = vmatprep.subr.mxu0 0.0
    %305 = vmatpush1.msra.mxu0 0.0
    %306 = vmatprep.subr.mxu0 0.0
    %307 = vmatpush1.msra.mxu0 0.0
    %308 = vmatprep.subr.mxu0 0.0
    %309 = vmatpush1.msra.mxu0 0.0
    %310 = vmatprep.subr.mxu0 0.0
    %311 = vmatpush1.msra.mxu0 0.0
    %312 = vmatprep.subr.mxu0 0.0
    %313 = vmatpush1.msra.mxu0 0.0
    %314 = vmatprep.subr.mxu0 0.0
    %315 = vmatpush1.msra.mxu0 0.0
    %316 = vmatprep.subr.mxu0 0.0
    %317 = vmatpush1.msra.mxu0 0.0
    %318 = vmatprep.subr.mxu0 0.0
    %319 = vmatpush1.msra.mxu0 0.0
    %320 = vmatprep.subr.mxu0 0.0
    %321 = vmatpush1.msra.mxu0 0.0
    %322 = vmatprep.subr.mxu0 0.0
    %323 = vmatpush1.msra.mxu0 0.0
    %324 = vmatprep.subr.mxu0 0.0
    %325 = vmatpush1.msra.mxu0 0.0
    %326 = vmatprep.subr.mxu0 0.0
    %327 = vmatpush1.msra.mxu0 0.0
    %328 = vmatprep.mubr.f32.mxu0 0.0
    %329 = vmatmul.mubr.f32.gmra.mrb[0].mxu0 %v262
    %v330 = vpop.f32.mrb[0].mxu0
    %v331 = vadd.f32 %v148, %v330
    %v332 = vpop.f32.mrb[0].mxu0
    %333 = vdwg.mxu0
    %v334 = vmax.f32 %v331, 0.0
    %v335 = vld [vmem:[%s3] sm:$0xff]
    %v336 = vld [vmem:[%s3 + $0x8] sm:$0xff]
    %v337 = vld [vmem:[%s4] sm:$0x1]
    %v339 = vlaneseq
    %v340 = vshrl.u32 %v339, 7
    %v341 = vsub.s32 0, %v340
    %v342 = vrot.slane %v337, %v341
    %vm344 = vcmask 130048
    %v346 = vsel %vm344, %v334, 0
    %348 = vmatprep.subr.mxu0 0.0
    %349 = vmatpush1.msra.mxu0 %v335
    %350 = vmatprep.subr.mxu0 0.0
    %351 = vmatpush1.msra.mxu0 %v336
    %352 = vmatprep.subr.mxu0 0.0
    %353 = vmatpush1.msra.mxu0 0.0
    %354 = vmatprep.subr.mxu0 0.0
    %355 = vmatpush1.msra.mxu0 0.0
    %356 = vmatprep.subr.mxu0 0.0
    %357 = vmatpush1.msra.mxu0 0.0
    %358 = vmatprep.subr.mxu0 0.0
    %359 = vmatpush1.msra.mxu0 0.0
    %360 = vmatprep.subr.mxu0 0.0
    %361 = vmatpush1.msra.mxu0 0.0
    %362 = vmatprep.subr.mxu0 0.0
    %363 = vmatpush1.msra.mxu0 0.0
    %364 = vmatprep.subr.mxu0 0.0
    %365 = vmatpush1.msra.mxu0 0.0
    %366 = vmatprep.subr.mxu0 0.0
    %367 = vmatpush1.msra.mxu0 0.0
    %368 = vmatprep.subr.mxu0 0.0
    %369 = vmatpush1.msra.mxu0 0.0
    %370 = vmatprep.subr.mxu0 0.0
    %371 = vmatpush1.msra.mxu0 0.0
    %372 = vmatprep.subr.mxu0 0.0
    %373 = vmatpush1.msra.mxu0 0.0
    %374 = vmatprep.subr.mxu0 0.0
    %375 = vmatpush1.msra.mxu0 0.0
    %376 = vmatprep.subr.mxu0 0.0
    %377 = vmatpush1.msra.mxu0 0.0
    %378 = vmatprep.subr.mxu0 0.0
    %379 = vmatpush1.msra.mxu0 0.0
    %380 = vmatprep.subr.mxu0 0.0
    %381 = vmatpush1.msra.mxu0 0.0
    %382 = vmatprep.subr.mxu0 0.0
    %383 = vmatpush1.msra.mxu0 0.0
    %384 = vmatprep.subr.mxu0 0.0
    %385 = vmatpush1.msra.mxu0 0.0
    %386 = vmatprep.subr.mxu0 0.0
    %387 = vmatpush1.msra.mxu0 0.0
    %388 = vmatprep.subr.mxu0 0.0
    %389 = vmatpush1.msra.mxu0 0.0
    %390 = vmatprep.subr.mxu0 0.0
    %391 = vmatpush1.msra.mxu0 0.0
    %392 = vmatprep.subr.mxu0 0.0
    %393 = vmatpush1.msra.mxu0 0.0
    %394 = vmatprep.subr.mxu0 0.0
    %395 = vmatpush1.msra.mxu0 0.0
    %396 = vmatprep.subr.mxu0 0.0
    %397 = vmatpush1.msra.mxu0 0.0
    %398 = vmatprep.subr.mxu0 0.0
    %399 = vmatpush1.msra.mxu0 0.0
    %400 = vmatprep.subr.mxu0 0.0
    %401 = vmatpush1.msra.mxu0 0.0
    %402 = vmatprep.subr.mxu0 0.0
    %403 = vmatpush1.msra.mxu0 0.0
    %404 = vmatprep.subr.mxu0 0.0
    %405 = vmatpush1.msra.mxu0 0.0
    %406 = vmatprep.subr.mxu0 0.0
    %407 = vmatpush1.msra.mxu0 0.0
    %408 = vmatprep.subr.mxu0 0.0
    %409 = vmatpush1.msra.mxu0 0.0
    %410 = vmatprep.subr.mxu0 0.0
    %411 = vmatpush1.msra.mxu0 0.0
    %412 = vmatprep.mubr.f32.mxu0 0.0
    %413 = vmatmul.mubr.f32.gmra.mrb[0].mxu0 %v346
    %v414 = vpop.f32.mrb[0].mxu0
    %v415 = vadd.f32 %v342, %v414
    %v416 = vpop.f32.mrb[0].mxu0
    %417 = vdwg.mxu0
    %v418 = vxor.u32 %v415, 2147483648
    %v419 = vmul.f32 %v418, 1.442695
    %v420 = vpow.pop %v419
    %v421 = vadd.f32 %v420, 1.0
    %v422 = vrcp.pop %v421
    %v423 = vmul.f32 1.0, %v422
    %v425 = vlaneseq
    %v426 = vshrl.u32 %v425, 7
    %v427 = vsub.s32 0, %v426
    %v428 = vrot.slane %v423, %v427
    %430 = vbcast.lane.b32.xlu0 %v428, 256
    %v431 = vpop.permute.xlu0 %430
    %s433 = sor.u32 256, 8
    %434 = vbcast.lane.b32.xlu0 %v428, %s433
    %v435 = vpop.permute.xlu0 %434
    %s437 = sor.u32 256, 16
    %438 = vbcast.lane.b32.xlu0 %v428, %s437
    %v439 = vpop.permute.xlu0 %438
    %s441 = sor.u32 256, 24
    %442 = vbcast.lane.b32.xlu0 %v428, %s441
    %v443 = vpop.permute.xlu0 %442
    %s445 = sor.u32 256, 32
    %446 = vbcast.lane.b32.xlu0 %v428, %s445
    %v447 = vpop.permute.xlu0 %446
    %s449 = sor.u32 256, 40
    %450 = vbcast.lane.b32.xlu0 %v428, %s449
    %v451 = vpop.permute.xlu0 %450
    %s453 = sor.u32 256, 48
    %454 = vbcast.lane.b32.xlu0 %v428, %s453
    %v455 = vpop.permute.xlu0 %454
    %s457 = sor.u32 256, 56
    %458 = vbcast.lane.b32.xlu0 %v428, %s457
    %v459 = vpop.permute.xlu0 %458
    %v460 = vlaneseq
    %v461 = vshrl.u32 %v460, 7
    %v462 = vsub.s32 1, %v461
    %v463 = vrot.slane %v423, %v462
    %465 = vbcast.lane.b32.xlu0 %v463, 256
    %v466 = vpop.permute.xlu0 %465
    %s468 = sor.u32 256, 8
    %469 = vbcast.lane.b32.xlu0 %v463, %s468
    %v470 = vpop.permute.xlu0 %469
    %s472 = sor.u32 256, 16
    %473 = vbcast.lane.b32.xlu0 %v463, %s472
    %v474 = vpop.permute.xlu0 %473
    %s476 = sor.u32 256, 24
    %477 = vbcast.lane.b32.xlu0 %v463, %s476
    %v478 = vpop.permute.xlu0 %477
    %s480 = sor.u32 256, 32
    %481 = vbcast.lane.b32.xlu0 %v463, %s480
    %v482 = vpop.permute.xlu0 %481
    %s484 = sor.u32 256, 40
    %485 = vbcast.lane.b32.xlu0 %v463, %s484
    %v486 = vpop.permute.xlu0 %485
    %s488 = sor.u32 256, 48
    %489 = vbcast.lane.b32.xlu0 %v463, %s488
    %v490 = vpop.permute.xlu0 %489
    %s492 = sor.u32 256, 56
    %493 = vbcast.lane.b32.xlu0 %v463, %s492
    %v494 = vpop.permute.xlu0 %493
    %v511 = vmul.f32 %v119, %v431
    %v512 = vmul.f32 %v120, %v435
    %v513 = vmul.f32 %v121, %v439
    %v514 = vmul.f32 %v122, %v443
    %v515 = vmul.f32 %v123, %v447
    %v516 = vmul.f32 %v124, %v451
    %v517 = vmul.f32 %v125, %v455
    %v518 = vmul.f32 %v126, %v459
    %v519 = vmul.f32 %v127, %v466
    %v520 = vmul.f32 %v128, %v470
    %v521 = vmul.f32 %v129, %v474
    %v522 = vmul.f32 %v130, %v478
    %v523 = vmul.f32 %v131, %v482
    %v524 = vmul.f32 %v132, %v486
    %v525 = vmul.f32 %v133, %v490
    %v526 = vmul.f32 %v134, %v494
    %v527 = vmul.f32 %v511, %v511
    %v528 = vmul.f32 %v512, %v512
    %v529 = vmul.f32 %v513, %v513
    %v530 = vmul.f32 %v514, %v514
    %v531 = vmul.f32 %v515, %v515
    %v532 = vmul.f32 %v516, %v516
    %v533 = vmul.f32 %v517, %v517
    %v534 = vmul.f32 %v518, %v518
    %v535 = vmul.f32 %v519, %v519
    %v536 = vmul.f32 %v520, %v520
    %v537 = vmul.f32 %v521, %v521
    %v538 = vmul.f32 %v522, %v522
    %v539 = vmul.f32 %v523, %v523
    %v540 = vmul.f32 %v524, %v524
    %v541 = vmul.f32 %v525, %v525
    %v542 = vmul.f32 %v526, %v526
    %559 = vset.pattern.permute.xlu0 0
    %560 = vperm.xlu0 %559, %v527
    %v561 = vpop.permute.xlu0 %560
    %562 = vset.pattern.permute.xlu0 0
    %563 = vperm.xlu0 %562, %v528
    %v564 = vpop.permute.xlu0 %563
    %565 = vset.pattern.permute.xlu0 0
    %566 = vperm.xlu0 %565, %v529
    %v567 = vpop.permute.xlu0 %566
    %568 = vset.pattern.permute.xlu0 0
    %569 = vperm.xlu0 %568, %v530
    %v570 = vpop.permute.xlu0 %569
    %571 = vset.pattern.permute.xlu0 0
    %572 = vperm.xlu0 %571, %v531
    %v573 = vpop.permute.xlu0 %572
    %574 = vset.pattern.permute.xlu0 0
    %575 = vperm.xlu0 %574, %v532
    %v576 = vpop.permute.xlu0 %575
    %577 = vset.pattern.permute.xlu0 0
    %578 = vperm.xlu0 %577, %v533
    %v579 = vpop.permute.xlu0 %578
    %580 = vset.pattern.permute.xlu0 0
    %581 = vperm.xlu0 %580, %v534
    %v582 = vpop.permute.xlu0 %581
    %583 = vset.pattern.permute.xlu0 0
    %584 = vperm.xlu0 %583, %v535
    %v585 = vpop.permute.xlu0 %584
    %586 = vset.pattern.permute.xlu0 0
    %587 = vperm.xlu0 %586, %v536
    %v588 = vpop.permute.xlu0 %587
    %589 = vset.pattern.permute.xlu0 0
    %590 = vperm.xlu0 %589, %v537
    %v591 = vpop.permute.xlu0 %590
    %592 = vset.pattern.permute.xlu0 0
    %593 = vperm.xlu0 %592, %v538
    %v594 = vpop.permute.xlu0 %593
    %595 = vset.pattern.permute.xlu0 0
    %596 = vperm.xlu0 %595, %v539
    %v597 = vpop.permute.xlu0 %596
    %598 = vset.pattern.permute.xlu0 0
    %599 = vperm.xlu0 %598, %v540
    %v600 = vpop.permute.xlu0 %599
    %601 = vset.pattern.permute.xlu0 0
    %602 = vperm.xlu0 %601, %v541
    %v603 = vpop.permute.xlu0 %602
    %604 = vset.pattern.permute.xlu0 0
    %605 = vperm.xlu0 %604, %v542
    %v606 = vpop.permute.xlu0 %605
    %v607 = vlaneseq
    %v608 = vshrl.u32 %v607, 7
    %v609 = vsub.s32 %v167, %v608
    %v610 = vrot.slane %v561, %v609
    %v611 = vlaneseq
    %v612 = vshrl.u32 %v611, 7
    %v613 = vsub.s32 %v172, %v612
    %v614 = vrot.slane %v564, %v613
    %v615 = vsel %vm177, %v614, %v610
    %v616 = vlaneseq
    %v617 = vshrl.u32 %v616, 7
    %v618 = vsub.s32 %v179, %v617
    %v619 = vrot.slane %v567, %v618
    %v620 = vsel %vm184, %v619, %v615
    %v621 = vlaneseq
    %v622 = vshrl.u32 %v621, 7
    %v623 = vsub.s32 %v186, %v622
    %v624 = vrot.slane %v570, %v623
    %v625 = vsel %vm191, %v624, %v620
    %v626 = vlaneseq
    %v627 = vshrl.u32 %v626, 7
    %v628 = vsub.s32 %v193, %v627
    %v629 = vrot.slane %v573, %v628
    %v630 = vsel %vm198, %v629, %v625
    %v631 = vlaneseq
    %v632 = vshrl.u32 %v631, 7
    %v633 = vsub.s32 %v200, %v632
    %v634 = vrot.slane %v576, %v633
    %v635 = vsel %vm205, %v634, %v630
    %v636 = vlaneseq
    %v637 = vshrl.u32 %v636, 7
    %v638 = vsub.s32 %v207, %v637
    %v639 = vrot.slane %v579, %v638
    %v640 = vsel %vm212, %v639, %v635
    %v641 = vlaneseq
    %v642 = vshrl.u32 %v641, 7
    %v643 = vsub.s32 %v214, %v642
    %v644 = vrot.slane %v582, %v643
    %v645 = vsel %vm219, %v644, %v640
    %v646 = vlaneseq
    %v647 = vshrl.u32 %v646, 7
    %v648 = vsub.s32 %v167, %v647
    %v649 = vrot.slane %v585, %v648
    %v650 = vlaneseq
    %v651 = vshrl.u32 %v650, 7
    %v652 = vsub.s32 %v172, %v651
    %v653 = vrot.slane %v588, %v652
    %v654 = vsel %vm177, %v653, %v649
    %v655 = vlaneseq
    %v656 = vshrl.u32 %v655, 7
    %v657 = vsub.s32 %v179, %v656
    %v658 = vrot.slane %v591, %v657
    %v659 = vsel %vm184, %v658, %v654
    %v660 = vlaneseq
    %v661 = vshrl.u32 %v660, 7
    %v662 = vsub.s32 %v186, %v661
    %v663 = vrot.slane %v594, %v662
    %v664 = vsel %vm191, %v663, %v659
    %v665 = vlaneseq
    %v666 = vshrl.u32 %v665, 7
    %v667 = vsub.s32 %v193, %v666
    %v668 = vrot.slane %v597, %v667
    %v669 = vsel %vm198, %v668, %v664
    %v670 = vlaneseq
    %v671 = vshrl.u32 %v670, 7
    %v672 = vsub.s32 %v200, %v671
    %v673 = vrot.slane %v600, %v672
    %v674 = vsel %vm205, %v673, %v669
    %v675 = vlaneseq
    %v676 = vshrl.u32 %v675, 7
    %v677 = vsub.s32 %v207, %v676
    %v678 = vrot.slane %v603, %v677
    %v679 = vsel %vm212, %v678, %v674
    %v680 = vlaneseq
    %v681 = vshrl.u32 %v680, 7
    %v682 = vsub.s32 %v214, %v681
    %v683 = vrot.slane %v606, %v682
    %v684 = vsel %vm219, %v683, %v679
    %v685 = vsel %vm260, %v684, %v645
    %vm687 = vcmask 517120
    %v688 = vsel %vm687, %v685, 0.0
    %689 = vadd.xlane.f32.xlu0 %v688
    %v690 = vpop.xlane.xlu0 %689
    %v691 = vmax.f32 %v690, 1e-24
    %v692 = vrsqrt.pop %v691
    %v694 = vlaneseq
    %v695 = vshrl.u32 %v694, 7
    %v696 = vsub.s32 0, %v695
    %v697 = vrot.slane %v692, %v696
    %v698 = vlaneseq
    %v699 = vshrl.u32 %v698, 7
    %v700 = vsub.s32 1, %v699
    %v701 = vrot.slane %v692, %v700
    %v704 = vmul.f32 %v511, %v697
    %v705 = vmul.f32 %v512, %v697
    %v706 = vmul.f32 %v513, %v697
    %v707 = vmul.f32 %v514, %v697
    %v708 = vmul.f32 %v515, %v697
    %v709 = vmul.f32 %v516, %v697
    %v710 = vmul.f32 %v517, %v697
    %v711 = vmul.f32 %v518, %v697
    %v712 = vmul.f32 %v519, %v701
    %v713 = vmul.f32 %v520, %v701
    %v714 = vmul.f32 %v521, %v701
    %v715 = vmul.f32 %v522, %v701
    %v716 = vmul.f32 %v523, %v701
    %v717 = vmul.f32 %v524, %v701
    %v718 = vmul.f32 %v525, %v701
    %v719 = vmul.f32 %v526, %v701
    %v720 = vld [vmem:[#allocation2] sm:$0xff]
    %v721 = vld [vmem:[#allocation2 + $0x8] sm:$0xff]
    %v722 = vld [vmem:[#allocation2 + $0x10] sm:$0xff]
    %v723 = vld [vmem:[#allocation2 + $0x18] sm:$0xff]
    %v724 = vld [vmem:[#allocation2 + $0x20] sm:$0xff]
    %v725 = vld [vmem:[#allocation2 + $0x28] sm:$0xff]
    %v726 = vld [vmem:[#allocation2 + $0x30] sm:$0xff]
    %v727 = vld [vmem:[#allocation2 + $0x38] sm:$0xff]
    %744 = vset.pattern.permute.xlu0 0
    %745 = vperm.xlu0 %744, %v704
    %v746 = vpop.permute.xlu0 %745
    %747 = vset.pattern.permute.xlu0 0
    %748 = vperm.xlu0 %747, %v705
    %v749 = vpop.permute.xlu0 %748
    %750 = vset.pattern.permute.xlu0 0
    %751 = vperm.xlu0 %750, %v706
    %v752 = vpop.permute.xlu0 %751
    %753 = vset.pattern.permute.xlu0 0
    %754 = vperm.xlu0 %753, %v707
    %v755 = vpop.permute.xlu0 %754
    %756 = vset.pattern.permute.xlu0 0
    %757 = vperm.xlu0 %756, %v708
    %v758 = vpop.permute.xlu0 %757
    %759 = vset.pattern.permute.xlu0 0
    %760 = vperm.xlu0 %759, %v709
    %v761 = vpop.permute.xlu0 %760
    %762 = vset.pattern.permute.xlu0 0
    %763 = vperm.xlu0 %762, %v710
    %v764 = vpop.permute.xlu0 %763
    %765 = vset.pattern.permute.xlu0 0
    %766 = vperm.xlu0 %765, %v711
    %v767 = vpop.permute.xlu0 %766
    %768 = vset.pattern.permute.xlu0 0
    %769 = vperm.xlu0 %768, %v712
    %v770 = vpop.permute.xlu0 %769
    %771 = vset.pattern.permute.xlu0 0
    %772 = vperm.xlu0 %771, %v713
    %v773 = vpop.permute.xlu0 %772
    %774 = vset.pattern.permute.xlu0 0
    %775 = vperm.xlu0 %774, %v714
    %v776 = vpop.permute.xlu0 %775
    %777 = vset.pattern.permute.xlu0 0
    %778 = vperm.xlu0 %777, %v715
    %v779 = vpop.permute.xlu0 %778
    %780 = vset.pattern.permute.xlu0 0
    %781 = vperm.xlu0 %780, %v716
    %v782 = vpop.permute.xlu0 %781
    %783 = vset.pattern.permute.xlu0 0
    %784 = vperm.xlu0 %783, %v717
    %v785 = vpop.permute.xlu0 %784
    %786 = vset.pattern.permute.xlu0 0
    %787 = vperm.xlu0 %786, %v718
    %v788 = vpop.permute.xlu0 %787
    %789 = vset.pattern.permute.xlu0 0
    %790 = vperm.xlu0 %789, %v719
    %v791 = vpop.permute.xlu0 %790
    %v792 = vlaneseq
    %v793 = vshrl.u32 %v792, 7
    %v794 = vsub.s32 %v167, %v793
    %v795 = vrot.slane %v746, %v794
    %v796 = vlaneseq
    %v797 = vshrl.u32 %v796, 7
    %v798 = vsub.s32 %v172, %v797
    %v799 = vrot.slane %v749, %v798
    %v800 = vsel %vm177, %v799, %v795
    %v801 = vlaneseq
    %v802 = vshrl.u32 %v801, 7
    %v803 = vsub.s32 %v179, %v802
    %v804 = vrot.slane %v752, %v803
    %v805 = vsel %vm184, %v804, %v800
    %v806 = vlaneseq
    %v807 = vshrl.u32 %v806, 7
    %v808 = vsub.s32 %v186, %v807
    %v809 = vrot.slane %v755, %v808
    %v810 = vsel %vm191, %v809, %v805
    %v811 = vlaneseq
    %v812 = vshrl.u32 %v811, 7
    %v813 = vsub.s32 %v193, %v812
    %v814 = vrot.slane %v758, %v813
    %v815 = vsel %vm198, %v814, %v810
    %v816 = vlaneseq
    %v817 = vshrl.u32 %v816, 7
    %v818 = vsub.s32 %v200, %v817
    %v819 = vrot.slane %v761, %v818
    %v820 = vsel %vm205, %v819, %v815
    %v821 = vlaneseq
    %v822 = vshrl.u32 %v821, 7
    %v823 = vsub.s32 %v207, %v822
    %v824 = vrot.slane %v764, %v823
    %v825 = vsel %vm212, %v824, %v820
    %v826 = vlaneseq
    %v827 = vshrl.u32 %v826, 7
    %v828 = vsub.s32 %v214, %v827
    %v829 = vrot.slane %v767, %v828
    %v830 = vsel %vm219, %v829, %v825
    %v831 = vlaneseq
    %v832 = vshrl.u32 %v831, 7
    %v833 = vsub.s32 %v167, %v832
    %v834 = vrot.slane %v770, %v833
    %v835 = vlaneseq
    %v836 = vshrl.u32 %v835, 7
    %v837 = vsub.s32 %v172, %v836
    %v838 = vrot.slane %v773, %v837
    %v839 = vsel %vm177, %v838, %v834
    %v840 = vlaneseq
    %v841 = vshrl.u32 %v840, 7
    %v842 = vsub.s32 %v179, %v841
    %v843 = vrot.slane %v776, %v842
    %v844 = vsel %vm184, %v843, %v839
    %v845 = vlaneseq
    %v846 = vshrl.u32 %v845, 7
    %v847 = vsub.s32 %v186, %v846
    %v848 = vrot.slane %v779, %v847
    %v849 = vsel %vm191, %v848, %v844
    %v850 = vlaneseq
    %v851 = vshrl.u32 %v850, 7
    %v852 = vsub.s32 %v193, %v851
    %v853 = vrot.slane %v782, %v852
    %v854 = vsel %vm198, %v853, %v849
    %v855 = vlaneseq
    %v856 = vshrl.u32 %v855, 7
    %v857 = vsub.s32 %v200, %v856
    %v858 = vrot.slane %v785, %v857
    %v859 = vsel %vm205, %v858, %v854
    %v860 = vlaneseq
    %v861 = vshrl.u32 %v860, 7
    %v862 = vsub.s32 %v207, %v861
    %v863 = vrot.slane %v788, %v862
    %v864 = vsel %vm212, %v863, %v859
    %v865 = vlaneseq
    %v866 = vshrl.u32 %v865, 7
    %v867 = vsub.s32 %v214, %v866
    %v868 = vrot.slane %v791, %v867
    %v869 = vsel %vm219, %v868, %v864
    %v870 = vsel %vm260, %v869, %v830
    %v871 = vsel %vm70, %v870, 0
    %873 = vmatprep.subr.mxu0 0.0
    %874 = vmatpush1.msra.mxu0 %v720
    %875 = vmatprep.subr.mxu0 0.0
    %876 = vmatpush1.msra.mxu0 %v721
    %877 = vmatprep.subr.mxu0 0.0
    %878 = vmatpush1.msra.mxu0 %v722
    %879 = vmatprep.subr.mxu0 0.0
    %880 = vmatpush1.msra.mxu0 %v723
    %881 = vmatprep.subr.mxu0 0.0
    %882 = vmatpush1.msra.mxu0 %v724
    %883 = vmatprep.subr.mxu0 0.0
    %884 = vmatpush1.msra.mxu0 %v725
    %885 = vmatprep.subr.mxu0 0.0
    %886 = vmatpush1.msra.mxu0 %v726
    %887 = vmatprep.subr.mxu0 0.0
    %888 = vmatpush1.msra.mxu0 %v727
    %889 = vmatprep.subr.mxu0 0.0
    %890 = vmatpush1.msra.mxu0 0.0
    %891 = vmatprep.subr.mxu0 0.0
    %892 = vmatpush1.msra.mxu0 0.0
    %893 = vmatprep.subr.mxu0 0.0
    %894 = vmatpush1.msra.mxu0 0.0
    %895 = vmatprep.subr.mxu0 0.0
    %896 = vmatpush1.msra.mxu0 0.0
    %897 = vmatprep.subr.mxu0 0.0
    %898 = vmatpush1.msra.mxu0 0.0
    %899 = vmatprep.subr.mxu0 0.0
    %900 = vmatpush1.msra.mxu0 0.0
    %901 = vmatprep.subr.mxu0 0.0
    %902 = vmatpush1.msra.mxu0 0.0
    %903 = vmatprep.subr.mxu0 0.0
    %904 = vmatpush1.msra.mxu0 0.0
    %905 = vmatprep.subr.mxu0 0.0
    %906 = vmatpush1.msra.mxu0 0.0
    %907 = vmatprep.subr.mxu0 0.0
    %908 = vmatpush1.msra.mxu0 0.0
    %909 = vmatprep.subr.mxu0 0.0
    %910 = vmatpush1.msra.mxu0 0.0
    %911 = vmatprep.subr.mxu0 0.0
    %912 = vmatpush1.msra.mxu0 0.0
    %913 = vmatprep.subr.mxu0 0.0
    %914 = vmatpush1.msra.mxu0 0.0
    %915 = vmatprep.subr.mxu0 0.0
    %916 = vmatpush1.msra.mxu0 0.0
    %917 = vmatprep.subr.mxu0 0.0
    %918 = vmatpush1.msra.mxu0 0.0
    %919 = vmatprep.subr.mxu0 0.0
    %920 = vmatpush1.msra.mxu0 0.0
    %921 = vmatprep.subr.mxu0 0.0
    %922 = vmatpush1.msra.mxu0 0.0
    %923 = vmatprep.subr.mxu0 0.0
    %924 = vmatpush1.msra.mxu0 0.0
    %925 = vmatprep.subr.mxu0 0.0
    %926 = vmatpush1.msra.mxu0 0.0
    %927 = vmatprep.subr.mxu0 0.0
    %928 = vmatpush1.msra.mxu0 0.0
    %929 = vmatprep.subr.mxu0 0.0
    %930 = vmatpush1.msra.mxu0 0.0
    %931 = vmatprep.subr.mxu0 0.0
    %932 = vmatpush1.msra.mxu0 0.0
    %933 = vmatprep.subr.mxu0 0.0
    %934 = vmatpush1.msra.mxu0 0.0
    %935 = vmatprep.subr.mxu0 0.0
    %936 = vmatpush1.msra.mxu0 0.0
    %937 = vmatprep.mubr.f32.mxu0 0.0
    %938 = vmatmul.mubr.f32.gmra.mrb[0].mxu0 %v871
    %v939 = vpop.f32.mrb[0].mxu0
    %v940 = vadd.f32 0.0, %v939
    %v941 = vpop.f32.mrb[0].mxu0
    %942 = vdwg.mxu0
    %943 = vst [vmem:[#allocation5] sm:$0x3] %v940
    // Predicated region
    $region30: #{tpu_custom_call.1} parent=1 // pred_check
      _
    $region31: #{tpu_custom_call.1} parent=1 // pred_check_branch
      %945 = sbr.rel (0) target = $region33
    $region32: #{tpu_custom_call.1} parent=1 // pred_region
      %s947 = ssub.s32 32, 32
      %948 = vsyncadd [#allocation4], %s947
      %s950 = sshll.u32 [#allocation5], 4
      %s951 = int_to_ptr.vmem [resolvable:$true] %s950
      %953 = dma.vmem_to_hbm [thread:$0]  %s951, 32, %s6, [#allocation4]
    $region33: #{tpu_custom_call.1} parent=1 // pred_fallthru
      _
    // Predicated region
    $region34: #{tpu_custom_call.1} parent=1 // pred_check
      _
    $region35: #{tpu_custom_call.1} parent=1 // pred_check_branch
      %955 = sbr.rel (0) target = $region37
    $region36: #{tpu_custom_call.1} parent=1 // pred_region
      %956 = dma.done [#allocation4], 32
    $region37: #{tpu_custom_call.1} parent=1 // pred_fallthru
      _
    %957 = vsyncpa [#allocation3], 1
    %958 = vsyncpa [#allocation4], 1

</llo_original>
